<compile_context>
chip_gen: v7x
topology: tpu7x:2x2x1
jax: 0.10.0
libtpu: 0.0.40
codegen_flags: <defaults>
</compile_context>

<pallas_src>
import functools

import jax
import jax.numpy as jnp
from jax.experimental import pallas as pl
from jax.experimental.pallas import tpu as pltpu


def ffn_kernel(x_ref, w1_ref, b1_ref, w2_ref, b2_ref, o_ref):
    w1 = w1_ref[...]
    w2 = w2_ref[...]

    # linear1 + bias + ReLU (MXU matmul, f32 accumulation; bias add in f32)
    x = x_ref[...].astype(w1.dtype)
    h = jnp.dot(x, w1, preferred_element_type=jnp.float32) + b1_ref[...]
    h = jnp.maximum(h, 0.0)

    # TODO(synk): dropout is eval-mode identity here; training-mode stochastic
    # dropout (mask + 1/(1-p) scaling) would use pltpu.prng_seed/prng_random_bits.

    # linear2 + bias
    y = jnp.dot(h.astype(w2.dtype), w2, preferred_element_type=jnp.float32)
    y = y + b2_ref[...]

    o_ref[...] = y.astype(o_ref.dtype)


def _round_up(a: int, b: int) -> int:
    return ((a + b - 1) // b) * b


@functools.partial(jax.jit, static_argnames=("tm", "matmul_dtype"))
def feed_forward(x, w1, b1, w2, b2, *, tm: int = 256, matmul_dtype=None):
    """x: [..., input_dim] f32 -> [..., input_dim] f32.

    w1: [input_dim, hidden], b1: [hidden], w2: [hidden, input_dim], b2: [input_dim].
    matmul_dtype: e.g. jnp.bfloat16 to use the MXU's native bf16 rate on v6e/v7x
    (accumulation stays f32); None keeps full f32 matmuls.
    """
    orig_shape = x.shape
    input_dim = x.shape[-1]
    hidden = w1.shape[1]
    assert w1.shape == (input_dim, hidden)
    assert w2.shape == (hidden, input_dim)

    x2 = x.reshape(-1, input_dim)
    n_rows = x2.shape[0]

    # --- Row-tile selection -------------------------------------------------
    # Big tile to amortize per-grid-step overhead and fill MXU rows, but keep
    # at least 2 grid steps (when possible) so v7x's 2 TensorCores both work.
    tm = max(8, _round_up(min(tm, n_rows), 8))
    if n_rows > 8:
        tm = min(tm, _round_up(pl.cdiv(n_rows, 2), 8))
    n_pad = _round_up(n_rows, tm)
    if n_pad != n_rows:
        x2 = jnp.pad(x2, ((0, n_pad - n_rows), (0, 0)))
    grid = (n_pad // tm,)

    # --- Parameter prep -----------------------------------------------------
    w_dtype = jnp.dtype(matmul_dtype) if matmul_dtype is not None else w1.dtype
    w1c = w1.astype(w_dtype)
    w2c = w2.astype(w_dtype)
    # Biases kept 2-D ([1, F], f32) so they broadcast cleanly in VMEM.
    b1_2d = b1.reshape(1, hidden).astype(jnp.float32)
    b2_2d = b2.reshape(1, input_dim).astype(jnp.float32)

    # --- VMEM budget (double-buffered tiles + resident weights + scratch) ----
    x_bytes = x2.dtype.itemsize
    w_bytes = w_dtype.itemsize
    vmem_est = (
        2 * tm * input_dim * x_bytes          # x tile (double-buffered)
        + 2 * tm * input_dim * x_bytes        # out tile (double-buffered)
        + 2 * (input_dim * hidden + hidden * input_dim) * w_bytes  # weights
        + 2 * (hidden + input_dim) * 4 * 2    # biases
        + 2 * tm * hidden * 4                 # intermediate h + slack
    )
    # Raise above the scoped default, leave headroom under v7x's 64 MiB VMEM.
    vmem_limit = min(max(int(vmem_est * 3) + (2 << 20), 32 << 20), 48 << 20)

    out = pl.pallas_call(
        ffn_kernel,
        out_shape=jax.ShapeDtypeStruct((n_pad, input_dim), x.dtype),
        grid_spec=pltpu.PrefetchScalarGridSpec(
            num_scalar_prefetch=0,
            grid=grid,
            in_specs=[
                pl.BlockSpec((tm, input_dim), lambda i: (i, 0)),       # x row tile
                pl.BlockSpec((input_dim, hidden), lambda i: (0, 0)),   # W1 (full)
                pl.BlockSpec((1, hidden), lambda i: (0, 0)),           # b1
                pl.BlockSpec((hidden, input_dim), lambda i: (0, 0)),   # W2 (full)
                pl.BlockSpec((1, input_dim), lambda i: (0, 0)),        # b2
            ],
            out_specs=pl.BlockSpec((tm, input_dim), lambda i: (i, 0)),
        ),
        compiler_params=pltpu.CompilerParams(
            dimension_semantics=("parallel",),
            vmem_limit_bytes=vmem_limit,
        ),
    )(x2, w1c, b1_2d, w2c, b2_2d)

    return out[:n_rows].reshape(orig_shape)


def feed_forward_ref(x, w1, b1, w2, b2):
    h = jnp.maximum(x @ w1 + b1, 0.0)
    return h @ w2 + b2


if __name__ == "__main__":
    # Small, lane-dense shapes consistent with FeedForwardNetwork(input_dim, hidden_ff_dim)
    batch, seq, input_dim, hidden_ff_dim = 4, 64, 128, 256

    key = jax.random.PRNGKey(0)
    kx, kw1, kb1, kw2, kb2 = jax.random.split(key, 5)

    x = jax.random.normal(kx, (batch, seq, input_dim), dtype=jnp.float32)

    # Deterministic init matching torch.nn.Linear's default uniform range.
    lim1 = 1.0 / jnp.sqrt(input_dim)
    w1 = jax.random.uniform(kw1, (input_dim, hidden_ff_dim), jnp.float32, -lim1, lim1)
    b1 = jax.random.uniform(kb1, (hidden_ff_dim,), jnp.float32, -lim1, lim1)
    lim2 = 1.0 / jnp.sqrt(hidden_ff_dim)
    w2 = jax.random.uniform(kw2, (hidden_ff_dim, input_dim), jnp.float32, -lim2, lim2)
    b2 = jax.random.uniform(kb2, (input_dim,), jnp.float32, -lim2, lim2)

    out = feed_forward(x, w1, b1, w2, b2)   # f32 matmuls (default) for tight tolerance
    out = jax.block_until_ready(out)

    ref = feed_forward_ref(x, w1, b1, w2, b2)
    assert out.shape == x.shape
    assert jnp.allclose(out, ref, atol=1e-5, rtol=1e-5), "mismatch vs reference"

    print("KERNEL_OK")
</pallas_src>

<mosaic_0001>
module attributes {stable_mosaic.version = 11 : i64} {
  func.func @ffn_kernel(%arg0: i32, %arg1: memref<128x128xf32, #tpu.memory_space<vmem>>, %arg2: memref<128x256xf32, #tpu.memory_space<vmem>>, %arg3: memref<1x256xf32, #tpu.memory_space<vmem>>, %arg4: memref<256x128xf32, #tpu.memory_space<vmem>>, %arg5: memref<1x128xf32, #tpu.memory_space<vmem>>, %arg6: memref<128x128xf32, #tpu.memory_space<vmem>>) attributes {dimension_semantics = [#tpu.dimension_semantics<parallel>], iteration_bounds = array<i64: 2>, scalar_prefetch = 0 : i64, scratch_operands = 0 : i64, tpu.core_type = #tpu.core_type<tc>, window_params = [{transform_indices = @transform_0, window_bounds = array<i64: 128, 128>}, {pipeline_mode = #tpu.pipeline_mode<synchronous>, transform_indices = @transform_1, window_bounds = array<i64: 128, 256>}, {pipeline_mode = #tpu.pipeline_mode<synchronous>, transform_indices = @transform_2, window_bounds = array<i64: 1, 256>}, {pipeline_mode = #tpu.pipeline_mode<synchronous>, transform_indices = @transform_3, window_bounds = array<i64: 256, 128>}, {pipeline_mode = #tpu.pipeline_mode<synchronous>, transform_indices = @transform_4, window_bounds = array<i64: 1, 128>}, {transform_indices = @transform_5, window_bounds = array<i64: 128, 128>}]} {
    %c0 = arith.constant 0 : index
    %c0_0 = arith.constant 0 : index
    %0 = vector.load %arg2[%c0, %c0_0] : memref<128x256xf32, #tpu.memory_space<vmem>>, vector<128x256xf32>
    %c0_1 = arith.constant 0 : index
    %c0_2 = arith.constant 0 : index
    %1 = vector.load %arg4[%c0_1, %c0_2] : memref<256x128xf32, #tpu.memory_space<vmem>>, vector<256x128xf32>
    %c0_3 = arith.constant 0 : index
    %c0_4 = arith.constant 0 : index
    %2 = vector.load %arg1[%c0_3, %c0_4] : memref<128x128xf32, #tpu.memory_space<vmem>>, vector<128x128xf32>
    %cst = arith.constant dense<0.000000e+00> : vector<128x256xf32>
    %3 = tpu.matmul %2, %0, %cst {dimension_numbers = #tpu.dot_dimension_numbers<[1], [0], [0], [1], [0, 0, 1, 1], [], []>} : vector<128x128xf32>, vector<128x256xf32>, vector<128x256xf32> -> vector<128x256xf32>
    %c0_5 = arith.constant 0 : index
    %c0_6 = arith.constant 0 : index
    %4 = vector.load %arg3[%c0_5, %c0_6] : memref<1x256xf32, #tpu.memory_space<vmem>>, vector<1x256xf32>
    %5 = vector.broadcast %4 : vector<1x256xf32> to vector<128x256xf32>
    %6 = arith.addf %3, %5 : vector<128x256xf32>
    %cst_7 = arith.constant 0.000000e+00 : f32
    %7 = vector.broadcast %cst_7 : f32 to vector<128x256xf32>
    %8 = arith.maximumf %6, %7 : vector<128x256xf32>
    %cst_8 = arith.constant dense<0.000000e+00> : vector<128x128xf32>
    %9 = tpu.matmul %8, %1, %cst_8 {dimension_numbers = #tpu.dot_dimension_numbers<[1], [0], [0], [1], [0, 0, 1, 1], [], []>} : vector<128x256xf32>, vector<256x128xf32>, vector<128x128xf32> -> vector<128x128xf32>
    %c0_9 = arith.constant 0 : index
    %c0_10 = arith.constant 0 : index
    %10 = vector.load %arg5[%c0_9, %c0_10] : memref<1x128xf32, #tpu.memory_space<vmem>>, vector<1x128xf32>
    %11 = vector.broadcast %10 : vector<1x128xf32> to vector<128x128xf32>
    %12 = arith.addf %9, %11 : vector<128x128xf32>
    %c0_11 = arith.constant 0 : index
    %c0_12 = arith.constant 0 : index
    %13 = vector.load %arg6[%c0_11, %c0_12] : memref<128x128xf32, #tpu.memory_space<vmem>>, vector<128x128xf32>
    tpu.vector_store %arg6[%c0_11, %c0_12], %12 {strides = array<i32>} : memref<128x128xf32, #tpu.memory_space<vmem>>, vector<128x128xf32>,
    return
  }
  func.func @transform_0(%arg0: i32) -> (i32, i32) {
    %c0_i32 = arith.constant 0 : i32
    %c0_i32_0 = arith.constant 0 : i32
    return %arg0, %c0_i32 : i32, i32
  }
  func.func @transform_1(%arg0: i32) -> (i32, i32) {
    %c0_i32 = arith.constant 0 : i32
    %c0_i32_0 = arith.constant 0 : i32
    %c0_i32_1 = arith.constant 0 : i32
    return %c0_i32, %c0_i32_0 : i32, i32
  }
  func.func @transform_2(%arg0: i32) -> (i32, i32) {
    %c0_i32 = arith.constant 0 : i32
    %c0_i32_0 = arith.constant 0 : i32
    %c0_i32_1 = arith.constant 0 : i32
    return %c0_i32, %c0_i32_0 : i32, i32
  }
  func.func @transform_3(%arg0: i32) -> (i32, i32) {
    %c0_i32 = arith.constant 0 : i32
    %c0_i32_0 = arith.constant 0 : i32
    %c0_i32_1 = arith.constant 0 : i32
    return %c0_i32, %c0_i32_0 : i32, i32
  }
  func.func @transform_4(%arg0: i32) -> (i32, i32) {
    %c0_i32 = arith.constant 0 : i32
    %c0_i32_0 = arith.constant 0 : i32
    %c0_i32_1 = arith.constant 0 : i32
    return %c0_i32, %c0_i32_0 : i32, i32
  }
  func.func @transform_5(%arg0: i32) -> (i32, i32) {
    %c0_i32 = arith.constant 0 : i32
    %c0_i32_0 = arith.constant 0 : i32
    return %arg0, %c0_i32 : i32, i32
  }
}

</mosaic_0001>

<llo_original>
// kernel: feed_forward.1
$region0: #{feed_forward.1}
  #allocation0 [shape = 'u32[]', space=smem, size = 0x4, offset = 0x4, fixed_abs, tag = 'smem constant byte address 0x4 - core index']
  #allocation1 [shape = 'u32[144,128]{1,0:T(1,128)}', space=vmem, size = 0x12000, scoped, tag = 'internal scratch']
  %s0 = inlined_call_operand.hbm [shape: f32[256,128], index: 0, kind: input, shape index: {}]
  %s1 = inlined_call_operand.hbm [shape: f32[128,256], index: 1, kind: input, shape index: {}]
  %s2 = inlined_call_operand.vmem [shape: f32[1,256], index: 2, kind: input, shape index: {}]
  %s3 = inlined_call_operand.hbm [shape: f32[256,128], index: 3, kind: input, shape index: {}]
  %s4 = inlined_call_operand.vmem [shape: f32[1,128], index: 4, kind: input, shape index: {}]
  %s5 = inlined_call_operand.hbm [shape: f32[256,128], index: 5, kind: output, shape index: {}]
  %s6 = sld [smem:[#allocation0]]
  $region65: #{feed_forward.1} parent=0
    _
  %s8 = ssub.s32 1, %s6
  %s9 = scalar_select 0, %s8, %s6
  $region1: #{feed_forward.1} parent=0
    #allocation2 [shape = 'u8[131072]{0}', space=vmem, size = 0x20000, scoped, tag = 'input window, operand 0']
    #allocation3 [shape = 's32[2]{0}', space=sflag, size = 0x8, scoped, tag = 'scoped memory for feed_forward.1']
    #allocation4 [shape = 's32[2]{0}', space=sflag, size = 0x8, scoped, tag = 'scoped memory for feed_forward.1']
    #allocation5 [shape = 'u8[131072]{0}', space=vmem, size = 0x20000, scoped, tag = 'input window, operand 1, single buffered']
    #allocation6 [shape = 's32[1]{0}', space=sflag, size = 0x4, scoped, tag = 'scoped memory for feed_forward.1']
    #allocation7 [shape = 'u8[131072]{0}', space=vmem, size = 0x20000, scoped, tag = 'input window, operand 3, single buffered']
    #allocation8 [shape = 'u8[131072]{0}', space=vmem, size = 0x20000, scoped, tag = 'output window, operand 0']
    %10 = vsyncpa [#allocation3], 0
    %s11 = scalar_lea.sflag [#allocation3], 1
    %12 = vsyncpa %s11, 0
    %13 = vsyncpa [#allocation6], 0
    %14 = vsyncpa [#allocation4], 0
    %s15 = scalar_lea.sflag [#allocation4], 1
    %16 = vsyncpa %s15, 0
    loop: start=0, step=1, limit=4
    $region2: #{feed_forward.1} parent=1 // loop_pre_header
      _
    $region3: #{feed_forward.1} parent=1 // loop_header
      %s18 = sphi 0, %s22
      %p19 = scmp.ge.s32.totalorder %s18, 4
      %s28 = sphi 0, %s30
      %s31 = sphi 0, %s28
      %s32 = sphi 0, %s31
      %s48 = sphi 0, %s32
      %s52 = sphi 0, %s52
      %s54 = sphi 0, %s52
      %s55 = sphi 0, %s54
      %s69 = sphi 0, %s55
      %s73 = sphi 0, %s73
      %s75 = sphi 0, %s73
      %s76 = sphi 0, %s75
      %s90 = sphi 0, %s76
      %s94 = sphi 0, %s94
      %s96 = sphi 0, %s94
      %s97 = sphi 0, %s96
      %s111 = sphi 0, %s97
      %s115 = sphi 0, %s115
      %s117 = sphi 0, %s115
      %s118 = sphi 0, %s117
      %s132 = sphi 0, %s118
      %s138 = sphi 0, %s140
      %s141 = sphi 0, %s138
      %s142 = sphi 0, %s141
      %s158 = sphi 0, %s142
    $region4: #{feed_forward.1} parent=1 // loop_header_branch
      %21 = sbr.rel (%p19) target = $region8
    $region5: #{feed_forward.1} parent=1 // loop_body
      %s23 = ssub.s32 %s18, 1
      %s24 = ssub.s32 %s18, 2
      %s25 = sadd.s32 %s18, 1
      %s26 = ssub.s32 %s18, %s25
      %p27 = scmp.eq.s32.totalorder %s26, 0
      %s29 = sadd.s32 %s28, 1
      %s30 = scalar_select %p27, %s28, %s29
      %p33 = pneg %p27
      %p34 = scmp.eq.s32.totalorder %s18, 1
      %p35 = por %p33, %p34
      %p36 = scmp.ne.s32.totalorder %s28, %s31
      %p37 = scmp.eq.s32.totalorder %s18, 0
      %p38 = por %p36, %p37
      %p39 = scmp.ne.s32.totalorder %s28, %s31
      %p40 = scmp.eq.s32.totalorder %s23, 1
      %p41 = por %p39, %p40
      %p42 = scmp.ne.s32.totalorder %s31, %s32
      %p43 = scmp.eq.s32.totalorder %s23, 0
      %p44 = por %p42, %p43
      %p45 = scmp.ne.s32.totalorder %s31, %s32
      %p46 = scmp.eq.s32.totalorder %s24, 1
      %p47 = por %p45, %p46
      %p49 = scmp.ne.s32.totalorder %s32, %s48
      %p50 = scmp.eq.s32.totalorder %s24, 0
      %p51 = por %p49, %p50
      %s53 = sadd.s32 %s52, 1
      %p56 = scmp.eq.s32.totalorder %s18, 1
      %p57 = scmp.ne.s32.totalorder %s52, %s54
      %p58 = scmp.eq.s32.totalorder %s18, 0
      %p59 = por %p57, %p58
      %p60 = scmp.ne.s32.totalorder %s52, %s54
      %p61 = scmp.eq.s32.totalorder %s23, 1
      %p62 = por %p60, %p61
      %p63 = scmp.ne.s32.totalorder %s54, %s55
      %p64 = scmp.eq.s32.totalorder %s23, 0
      %p65 = por %p63, %p64
      %p66 = scmp.ne.s32.totalorder %s54, %s55
      %p67 = scmp.eq.s32.totalorder %s24, 1
      %p68 = por %p66, %p67
      %p70 = scmp.ne.s32.totalorder %s55, %s69
      %p71 = scmp.eq.s32.totalorder %s24, 0
      %p72 = por %p70, %p71
      %s74 = sadd.s32 %s73, 1
      %p77 = scmp.eq.s32.totalorder %s18, 1
      %p78 = scmp.ne.s32.totalorder %s73, %s75
      %p79 = scmp.eq.s32.totalorder %s18, 0
      %p80 = por %p78, %p79
      %p81 = scmp.ne.s32.totalorder %s73, %s75
      %p82 = scmp.eq.s32.totalorder %s23, 1
      %p83 = por %p81, %p82
      %p84 = scmp.ne.s32.totalorder %s75, %s76
      %p85 = scmp.eq.s32.totalorder %s23, 0
      %p86 = por %p84, %p85
      %p87 = scmp.ne.s32.totalorder %s75, %s76
      %p88 = scmp.eq.s32.totalorder %s24, 1
      %p89 = por %p87, %p88
      %p91 = scmp.ne.s32.totalorder %s76, %s90
      %p92 = scmp.eq.s32.totalorder %s24, 0
      %p93 = por %p91, %p92
      %s95 = sadd.s32 %s94, 1
      %p98 = scmp.eq.s32.totalorder %s18, 1
      %p99 = scmp.ne.s32.totalorder %s94, %s96
      %p100 = scmp.eq.s32.totalorder %s18, 0
      %p101 = por %p99, %p100
      %p102 = scmp.ne.s32.totalorder %s94, %s96
      %p103 = scmp.eq.s32.totalorder %s23, 1
      %p104 = por %p102, %p103
      %p105 = scmp.ne.s32.totalorder %s96, %s97
      %p106 = scmp.eq.s32.totalorder %s23, 0
      %p107 = por %p105, %p106
      %p108 = scmp.ne.s32.totalorder %s96, %s97
      %p109 = scmp.eq.s32.totalorder %s24, 1
      %p110 = por %p108, %p109
      %p112 = scmp.ne.s32.totalorder %s97, %s111
      %p113 = scmp.eq.s32.totalorder %s24, 0
      %p114 = por %p112, %p113
      %s116 = sadd.s32 %s115, 1
      %p119 = scmp.eq.s32.totalorder %s18, 1
      %p120 = scmp.ne.s32.totalorder %s115, %s117
      %p121 = scmp.eq.s32.totalorder %s18, 0
      %p122 = por %p120, %p121
      %p123 = scmp.ne.s32.totalorder %s115, %s117
      %p124 = scmp.eq.s32.totalorder %s23, 1
      %p125 = por %p123, %p124
      %p126 = scmp.ne.s32.totalorder %s117, %s118
      %p127 = scmp.eq.s32.totalorder %s23, 0
      %p128 = por %p126, %p127
      %p129 = scmp.ne.s32.totalorder %s117, %s118
      %p130 = scmp.eq.s32.totalorder %s24, 1
      %p131 = por %p129, %p130
      %p133 = scmp.ne.s32.totalorder %s118, %s132
      %p134 = scmp.eq.s32.totalorder %s24, 0
      %p135 = por %p133, %p134
      %s136 = ssub.s32 %s18, %s25
      %p137 = scmp.eq.s32.totalorder %s136, 0
      %s139 = sadd.s32 %s138, 1
      %s140 = scalar_select %p137, %s138, %s139
      %p143 = pneg %p137
      %p144 = scmp.eq.s32.totalorder %s18, 1
      %p145 = por %p143, %p144
      %p146 = scmp.ne.s32.totalorder %s138, %s141
      %p147 = scmp.eq.s32.totalorder %s18, 0
      %p148 = por %p146, %p147
      %p149 = scmp.ne.s32.totalorder %s138, %s141
      %p150 = scmp.eq.s32.totalorder %s23, 1
      %p151 = por %p149, %p150
      %p152 = scmp.ne.s32.totalorder %s141, %s142
      %p153 = scmp.eq.s32.totalorder %s23, 0
      %p154 = por %p152, %p153
      %p155 = scmp.ne.s32.totalorder %s141, %s142
      %p156 = scmp.eq.s32.totalorder %s24, 1
      %p157 = por %p155, %p156
      %p159 = scmp.ne.s32.totalorder %s142, %s158
      %p160 = scmp.eq.s32.totalorder %s24, 0
      %p161 = por %p159, %p160
      %p162 = scmp.le.s32.totalorder 1, %s18
      %p163 = scmp.lt.s32.totalorder %s18, 3
      %p164 = pnand %p162, %p163
      %p165 = pneg %p164
      // Predicated region
      $region9: #{feed_forward.1} parent=5 // pred_check
        _
      $region10: #{feed_forward.1} parent=5 // pred_check_branch
        %167 = sbr.rel (%p164) target = $region12
      $region11: #{feed_forward.1} parent=5 // pred_region
        %s168 = ssub.s32 %s18, 1
        // Predicated region
        $region13: #{feed_forward.1} parent=11 // pred_check
          %p169 = pneg %p65
        $region14: #{feed_forward.1} parent=11 // pred_check_branch
          %171 = sbr.rel (%p169) target = $region16
        $region15: #{feed_forward.1} parent=11 // pred_region
          %s173 = ssub.s32 4096, 4096
          %174 = vsyncadd [#allocation6], %s173
          %s175 = sshll.u32 [#allocation5], 4
          %s176 = int_to_ptr.vmem [resolvable:$true] %s175
          %181 = dma.hbm_to_vmem [thread:$0]  %s1, 4096, %s176, [#allocation6], 256, 256, 16
        $region16: #{feed_forward.1} parent=11 // pred_fallthru
          _
        // Predicated region
        $region17: #{feed_forward.1} parent=11 // pred_check
          %p182 = pneg %p86
        $region18: #{feed_forward.1} parent=11 // pred_check_branch
          %184 = sbr.rel (%p182) target = $region20
        $region19: #{feed_forward.1} parent=11 // pred_region
          _
        $region20: #{feed_forward.1} parent=11 // pred_fallthru
          _
        // Predicated region
        $region21: #{feed_forward.1} parent=11 // pred_check
          %p185 = pneg %p107
        $region22: #{feed_forward.1} parent=11 // pred_check_branch
          %187 = sbr.rel (%p185) target = $region24
        $region23: #{feed_forward.1} parent=11 // pred_region
          %s189 = ssub.s32 4096, 4096
          %190 = vsyncadd [#allocation6], %s189
          %s191 = sshll.u32 [#allocation7], 4
          %s192 = int_to_ptr.vmem [resolvable:$true] %s191
          %197 = dma.hbm_to_vmem [thread:$0]  %s3, 4096, %s192, [#allocation6], 128, 128, 8
        $region24: #{feed_forward.1} parent=11 // pred_fallthru
          _
        // Predicated region
        $region25: #{feed_forward.1} parent=11 // pred_check
          %p198 = pneg %p128
        $region26: #{feed_forward.1} parent=11 // pred_check_branch
          %200 = sbr.rel (%p198) target = $region28
        $region27: #{feed_forward.1} parent=11 // pred_region
          _
        $region28: #{feed_forward.1} parent=11 // pred_fallthru
          _
      $region12: #{feed_forward.1} parent=5 // pred_fallthru
        _
      %p201 = scmp.lt.s32.totalorder %s18, 2
      // Predicated region
      $region29: #{feed_forward.1} parent=5 // pred_check
        %p202 = pneg %p201
      $region30: #{feed_forward.1} parent=5 // pred_check_branch
        %204 = sbr.rel (%p202) target = $region32
      $region31: #{feed_forward.1} parent=5 // pred_region
        // Predicated region
        $region33: #{feed_forward.1} parent=31 // pred_check
          %p205 = pneg %p38
        $region34: #{feed_forward.1} parent=31 // pred_check_branch
          %207 = sbr.rel (%p205) target = $region36
        $region35: #{feed_forward.1} parent=31 // pred_region
          %s208 = sand.u32 %s28, 1
          %s209 = scalar_lea.sflag [#allocation3], %s208
          %s210 = sand.u32 %s28, 1
          %s211 = smul.addr %s210, 128
          %s212 = scalar_lea.vmem [#allocation2], %s211
          %s213 = smul.u32 16, %s18
          %s215 = ssub.s32 2048, 2048
          %216 = vsyncadd %s209, %s215
          %s217 = smul.addr %s213, 128
          %s218 = scalar_lea.hbm %s0, %s217
          %s219 = sshll.u32 %s212, 4
          %s220 = int_to_ptr.vmem [resolvable:$true] %s219
          %225 = dma.hbm_to_vmem [thread:$0]  %s218, 2048, %s220, %s209, 128, 128, 8
        $region36: #{feed_forward.1} parent=31 // pred_fallthru
          _
      $region32: #{feed_forward.1} parent=5 // pred_fallthru
        _
      %p226 = scmp.le.s32.totalorder 1, %s18
      %p227 = scmp.lt.s32.totalorder %s18, 3
      %p228 = pnand %p226, %p227
      %p229 = pneg %p228
      // Predicated region
      $region37: #{feed_forward.1} parent=5 // pred_check
        _
      $region38: #{feed_forward.1} parent=5 // pred_check_branch
        %231 = sbr.rel (%p228) target = $region40
      $region39: #{feed_forward.1} parent=5 // pred_region
        %s232 = ssub.s32 %s18, 1
        %s233 = sand.u32 %s31, 1
        %s234 = scalar_lea.sflag [#allocation3], %s233
        %s235 = sand.u32 %s31, 1
        %s236 = smul.addr %s235, 128
        %s237 = scalar_lea.vmem [#allocation2], %s236
        // Predicated region
        $region41: #{feed_forward.1} parent=39 // pred_check
          %p238 = pneg %p44
        $region42: #{feed_forward.1} parent=39 // pred_check_branch
          %240 = sbr.rel (%p238) target = $region44
        $region43: #{feed_forward.1} parent=39 // pred_region
          %241 = dma.done %s234, 2048
        $region44: #{feed_forward.1} parent=39 // pred_fallthru
          _
        // Predicated region
        $region45: #{feed_forward.1} parent=39 // pred_check
          %p242 = pneg %p65
        $region46: #{feed_forward.1} parent=39 // pred_check_branch
          %244 = sbr.rel (%p242) target = $region48
        $region47: #{feed_forward.1} parent=39 // pred_region
          %245 = dma.done [#allocation6], 4096
        $region48: #{feed_forward.1} parent=39 // pred_fallthru
          _
        // Predicated region
        $region49: #{feed_forward.1} parent=39 // pred_check
          %p246 = pneg %p107
        $region50: #{feed_forward.1} parent=39 // pred_check_branch
          %248 = sbr.rel (%p246) target = $region52
        $region51: #{feed_forward.1} parent=39 // pred_region
          %249 = dma.done [#allocation6], 4096
        $region52: #{feed_forward.1} parent=39 // pred_fallthru
          _
        %s250 = sand.u32 %s31, 1
        %s251 = scalar_lea.sflag [#allocation3], %s250
        %s252 = sand.u32 %s31, 1
        %s253 = smul.addr %s252, 128
        %s254 = scalar_lea.vmem [#allocation2], %s253
        %p255 = pneg %p44
        %p256 = pneg %p41
        %p257 = pneg %p65
        %p258 = pneg %p62
        %p259 = pneg %p86
        %p260 = pneg %p83
        %p261 = pneg %p107
        %p262 = pneg %p104
        %p263 = pneg %p128
        %p264 = pneg %p125
        %p265 = pneg %p154
        %p266 = pneg %p151
        %s267 = sand.u32 %s141, 1
        %s268 = scalar_lea.sflag [#allocation4], %s267
        %s269 = sand.u32 %s141, 1
        %s270 = smul.addr %s269, 128
        %s271 = scalar_lea.vmem [#allocation8], %s270
        %s272 = smul.u32 16, %s23
        %s273 = smul.u32 16, %s23
        %v274 = vld [vmem:[#allocation5] sm:$0xff]
        %v275 = vld [vmem:[#allocation5 + $0x8] sm:$0xff]
        %v276 = vld [vmem:[#allocation5 + $0x10] sm:$0xff]
        %v277 = vld [vmem:[#allocation5 + $0x18] sm:$0xff]
        %v278 = vld [vmem:[#allocation5 + $0x20] sm:$0xff]
        %v279 = vld [vmem:[#allocation5 + $0x28] sm:$0xff]
        %v280 = vld [vmem:[#allocation5 + $0x30] sm:$0xff]
        %v281 = vld [vmem:[#allocation5 + $0x38] sm:$0xff]
        %v282 = vld [vmem:[#allocation5 + $0x40] sm:$0xff]
        %v283 = vld [vmem:[#allocation5 + $0x48] sm:$0xff]
        %v284 = vld [vmem:[#allocation5 + $0x50] sm:$0xff]
        %v285 = vld [vmem:[#allocation5 + $0x58] sm:$0xff]
        %v286 = vld [vmem:[#allocation5 + $0x60] sm:$0xff]
        %v287 = vld [vmem:[#allocation5 + $0x68] sm:$0xff]
        %v288 = vld [vmem:[#allocation5 + $0x70] sm:$0xff]
        %v289 = vld [vmem:[#allocation5 + $0x78] sm:$0xff]
        %v290 = vld [vmem:[#allocation5 + $0x80] sm:$0xff]
        %v291 = vld [vmem:[#allocation5 + $0x88] sm:$0xff]
        %v292 = vld [vmem:[#allocation5 + $0x90] sm:$0xff]
        %v293 = vld [vmem:[#allocation5 + $0x98] sm:$0xff]
        %v294 = vld [vmem:[#allocation5 + $0xa0] sm:$0xff]
        %v295 = vld [vmem:[#allocation5 + $0xa8] sm:$0xff]
        %v296 = vld [vmem:[#allocation5 + $0xb0] sm:$0xff]
        %v297 = vld [vmem:[#allocation5 + $0xb8] sm:$0xff]
        %v298 = vld [vmem:[#allocation5 + $0xc0] sm:$0xff]
        %v299 = vld [vmem:[#allocation5 + $0xc8] sm:$0xff]
        %v300 = vld [vmem:[#allocation5 + $0xd0] sm:$0xff]
        %v301 = vld [vmem:[#allocation5 + $0xd8] sm:$0xff]
        %v302 = vld [vmem:[#allocation5 + $0xe0] sm:$0xff]
        %v303 = vld [vmem:[#allocation5 + $0xe8] sm:$0xff]
        %v304 = vld [vmem:[#allocation5 + $0xf0] sm:$0xff]
        %v305 = vld [vmem:[#allocation5 + $0xf8] sm:$0xff]
        %v306 = vld [vmem:[#allocation7] sm:$0xff]
        %v307 = vld [vmem:[#allocation7 + $0x8] sm:$0xff]
        %v308 = vld [vmem:[#allocation7 + $0x10] sm:$0xff]
        %v309 = vld [vmem:[#allocation7 + $0x18] sm:$0xff]
        %v310 = vld [vmem:[#allocation7 + $0x20] sm:$0xff]
        %v311 = vld [vmem:[#allocation7 + $0x28] sm:$0xff]
        %v312 = vld [vmem:[#allocation7 + $0x30] sm:$0xff]
        %v313 = vld [vmem:[#allocation7 + $0x38] sm:$0xff]
        %v314 = vld [vmem:[#allocation7 + $0x40] sm:$0xff]
        %v315 = vld [vmem:[#allocation7 + $0x48] sm:$0xff]
        %v316 = vld [vmem:[#allocation7 + $0x50] sm:$0xff]
        %v317 = vld [vmem:[#allocation7 + $0x58] sm:$0xff]
        %v318 = vld [vmem:[#allocation7 + $0x60] sm:$0xff]
        %v319 = vld [vmem:[#allocation7 + $0x68] sm:$0xff]
        %v320 = vld [vmem:[#allocation7 + $0x70] sm:$0xff]
        %v321 = vld [vmem:[#allocation7 + $0x78] sm:$0xff]
        %v322 = vld [vmem:[#allocation7 + $0x80] sm:$0xff]
        %v323 = vld [vmem:[#allocation7 + $0x88] sm:$0xff]
        %v324 = vld [vmem:[#allocation7 + $0x90] sm:$0xff]
        %v325 = vld [vmem:[#allocation7 + $0x98] sm:$0xff]
        %v326 = vld [vmem:[#allocation7 + $0xa0] sm:$0xff]
        %v327 = vld [vmem:[#allocation7 + $0xa8] sm:$0xff]
        %v328 = vld [vmem:[#allocation7 + $0xb0] sm:$0xff]
        %v329 = vld [vmem:[#allocation7 + $0xb8] sm:$0xff]
        %v330 = vld [vmem:[#allocation7 + $0xc0] sm:$0xff]
        %v331 = vld [vmem:[#allocation7 + $0xc8] sm:$0xff]
        %v332 = vld [vmem:[#allocation7 + $0xd0] sm:$0xff]
        %v333 = vld [vmem:[#allocation7 + $0xd8] sm:$0xff]
        %v334 = vld [vmem:[#allocation7 + $0xe0] sm:$0xff]
        %v335 = vld [vmem:[#allocation7 + $0xe8] sm:$0xff]
        %v336 = vld [vmem:[#allocation7 + $0xf0] sm:$0xff]
        %v337 = vld [vmem:[#allocation7 + $0xf8] sm:$0xff]
        %v338 = vld [vmem:[%s237] sm:$0xff]
        %v339 = vld [vmem:[%s237 + $0x8] sm:$0xff]
        %v340 = vld [vmem:[%s237 + $0x10] sm:$0xff]
        %v341 = vld [vmem:[%s237 + $0x18] sm:$0xff]
        %v342 = vld [vmem:[%s237 + $0x20] sm:$0xff]
        %v343 = vld [vmem:[%s237 + $0x28] sm:$0xff]
        %v344 = vld [vmem:[%s237 + $0x30] sm:$0xff]
        %v345 = vld [vmem:[%s237 + $0x38] sm:$0xff]
        %v346 = vld [vmem:[%s237 + $0x40] sm:$0xff]
        %v347 = vld [vmem:[%s237 + $0x48] sm:$0xff]
        %v348 = vld [vmem:[%s237 + $0x50] sm:$0xff]
        %v349 = vld [vmem:[%s237 + $0x58] sm:$0xff]
        %v350 = vld [vmem:[%s237 + $0x60] sm:$0xff]
        %v351 = vld [vmem:[%s237 + $0x68] sm:$0xff]
        %v352 = vld [vmem:[%s237 + $0x70] sm:$0xff]
        %v353 = vld [vmem:[%s237 + $0x78] sm:$0xff]
        %v354 = vld [vmem:[%s2] sm:$0x3]
        %v356 = vlaneseq
        %v357 = vshrl.u32 %v356, 7
        %v358 = vsub.s32 0, %v357
        %v359 = vrot.slane %v354, %v358
        %v360 = vlaneseq
        %v361 = vshrl.u32 %v360, 7
        %v362 = vsub.s32 1, %v361
        %v363 = vrot.slane %v354, %v362
        %366 = vmatprep.subr.mxu0 %v275
        %367 = vmatpush1.msra.mxu0 %v274
        %368 = vmatprep.subr.mxu0 %v277
        %369 = vmatpush1.msra.mxu0 %v276
        %370 = vmatprep.subr.mxu0 %v279
        %371 = vmatpush1.msra.mxu0 %v278
        %372 = vmatprep.subr.mxu0 %v281
        %373 = vmatpush1.msra.mxu0 %v280
        %374 = vmatprep.subr.mxu0 %v283
        %375 = vmatpush1.msra.mxu0 %v282
        %376 = vmatprep.subr.mxu0 %v285
        %377 = vmatpush1.msra.mxu0 %v284
        %378 = vmatprep.subr.mxu0 %v287
        %379 = vmatpush1.msra.mxu0 %v286
        %380 = vmatprep.subr.mxu0 %v289
        %381 = vmatpush1.msra.mxu0 %v288
        %382 = vmatprep.subr.mxu0 %v291
        %383 = vmatpush1.msra.mxu0 %v290
        %384 = vmatprep.subr.mxu0 %v293
        %385 = vmatpush1.msra.mxu0 %v292
        %386 = vmatprep.subr.mxu0 %v295
        %387 = vmatpush1.msra.mxu0 %v294
        %388 = vmatprep.subr.mxu0 %v297
        %389 = vmatpush1.msra.mxu0 %v296
        %390 = vmatprep.subr.mxu0 %v299
        %391 = vmatpush1.msra.mxu0 %v298
        %392 = vmatprep.subr.mxu0 %v301
        %393 = vmatpush1.msra.mxu0 %v300
        %394 = vmatprep.subr.mxu0 %v303
        %395 = vmatpush1.msra.mxu0 %v302
        %396 = vmatprep.subr.mxu0 %v305
        %397 = vmatpush1.msra.mxu0 %v304
        %398 = vmatprep.subr.mxu0 0.0
        %399 = vmatpush1.msra.mxu0 0.0
        %400 = vmatprep.subr.mxu0 0.0
        %401 = vmatpush1.msra.mxu0 0.0
        %402 = vmatprep.subr.mxu0 0.0
        %403 = vmatpush1.msra.mxu0 0.0
        %404 = vmatprep.subr.mxu0 0.0
        %405 = vmatpush1.msra.mxu0 0.0
        %406 = vmatprep.subr.mxu0 0.0
        %407 = vmatpush1.msra.mxu0 0.0
        %408 = vmatprep.subr.mxu0 0.0
        %409 = vmatpush1.msra.mxu0 0.0
        %410 = vmatprep.subr.mxu0 0.0
        %411 = vmatpush1.msra.mxu0 0.0
        %412 = vmatprep.subr.mxu0 0.0
        %413 = vmatpush1.msra.mxu0 0.0
        %414 = vmatprep.subr.mxu0 0.0
        %415 = vmatpush1.msra.mxu0 0.0
        %416 = vmatprep.subr.mxu0 0.0
        %417 = vmatpush1.msra.mxu0 0.0
        %418 = vmatprep.subr.mxu0 0.0
        %419 = vmatpush1.msra.mxu0 0.0
        %420 = vmatprep.subr.mxu0 0.0
        %421 = vmatpush1.msra.mxu0 0.0
        %422 = vmatprep.subr.mxu0 0.0
        %423 = vmatpush1.msra.mxu0 0.0
        %424 = vmatprep.subr.mxu0 0.0
        %425 = vmatpush1.msra.mxu0 0.0
        %426 = vmatprep.subr.mxu0 0.0
        %427 = vmatpush1.msra.mxu0 0.0
        %428 = vmatprep.subr.mxu0 0.0
        %429 = vmatpush1.msra.mxu0 0.0
        %430 = vmatprep.mubr.f32.mxu0 0.0
        %431 = vmatmul.mubr.f32.gmra.mrb[0].mxu0 %v338
        %v432 = vpop.f32.mrb[0].mxu0
        %v433 = vadd.f32 %v359, %v432
        %v434 = vpop.f32.mrb[0].mxu0
        %v435 = vadd.f32 %v363, %v434
        %436 = vmatprep.mubr.f32.mxu0 0.0
        %437 = vmatmul.mubr.f32.gmra.mrb[0].mxu0 %v339
        %v438 = vpop.f32.mrb[0].mxu0
        %v439 = vadd.f32 %v359, %v438
        %v440 = vpop.f32.mrb[0].mxu0
        %v441 = vadd.f32 %v363, %v440
        %442 = vmatprep.mubr.f32.mxu0 0.0
        %443 = vmatmul.mubr.f32.gmra.mrb[0].mxu0 %v340
        %v444 = vpop.f32.mrb[0].mxu0
        %v445 = vadd.f32 %v359, %v444
        %v446 = vpop.f32.mrb[0].mxu0
        %v447 = vadd.f32 %v363, %v446
        %448 = vmatprep.mubr.f32.mxu0 0.0
        %449 = vmatmul.mubr.f32.gmra.mrb[0].mxu0 %v341
        %v450 = vpop.f32.mrb[0].mxu0
        %v451 = vadd.f32 %v359, %v450
        %v452 = vpop.f32.mrb[0].mxu0
        %v453 = vadd.f32 %v363, %v452
        %454 = vmatprep.mubr.f32.mxu0 0.0
        %455 = vmatmul.mubr.f32.gmra.mrb[0].mxu0 %v342
        %v456 = vpop.f32.mrb[0].mxu0
        %v457 = vadd.f32 %v359, %v456
        %v458 = vpop.f32.mrb[0].mxu0
        %v459 = vadd.f32 %v363, %v458
        %460 = vmatprep.mubr.f32.mxu0 0.0
        %461 = vmatmul.mubr.f32.gmra.mrb[0].mxu0 %v343
        %v462 = vpop.f32.mrb[0].mxu0
        %v463 = vadd.f32 %v359, %v462
        %v464 = vpop.f32.mrb[0].mxu0
        %v465 = vadd.f32 %v363, %v464
        %466 = vmatprep.mubr.f32.mxu0 0.0
        %467 = vmatmul.mubr.f32.gmra.mrb[0].mxu0 %v344
        %v468 = vpop.f32.mrb[0].mxu0
        %v469 = vadd.f32 %v359, %v468
        %v470 = vpop.f32.mrb[0].mxu0
        %v471 = vadd.f32 %v363, %v470
        %472 = vmatprep.mubr.f32.mxu0 0.0
        %473 = vmatmul.mubr.f32.gmra.mrb[0].mxu0 %v345
        %v474 = vpop.f32.mrb[0].mxu0
        %v475 = vadd.f32 %v359, %v474
        %v476 = vpop.f32.mrb[0].mxu0
        %v477 = vadd.f32 %v363, %v476
        %478 = vmatprep.mubr.f32.mxu0 0.0
        %479 = vmatmul.mubr.f32.gmra.mrb[0].mxu0 %v346
        %v480 = vpop.f32.mrb[0].mxu0
        %v481 = vadd.f32 %v359, %v480
        %v482 = vpop.f32.mrb[0].mxu0
        %v483 = vadd.f32 %v363, %v482
        %484 = vmatprep.mubr.f32.mxu0 0.0
        %485 = vmatmul.mubr.f32.gmra.mrb[0].mxu0 %v347
        %v486 = vpop.f32.mrb[0].mxu0
        %v487 = vadd.f32 %v359, %v486
        %v488 = vpop.f32.mrb[0].mxu0
        %v489 = vadd.f32 %v363, %v488
        %490 = vmatprep.mubr.f32.mxu0 0.0
        %491 = vmatmul.mubr.f32.gmra.mrb[0].mxu0 %v348
        %v492 = vpop.f32.mrb[0].mxu0
        %v493 = vadd.f32 %v359, %v492
        %v494 = vpop.f32.mrb[0].mxu0
        %v495 = vadd.f32 %v363, %v494
        %496 = vmatprep.mubr.f32.mxu0 0.0
        %497 = vmatmul.mubr.f32.gmra.mrb[0].mxu0 %v349
        %v498 = vpop.f32.mrb[0].mxu0
        %v499 = vadd.f32 %v359, %v498
        %v500 = vpop.f32.mrb[0].mxu0
        %v501 = vadd.f32 %v363, %v500
        %502 = vmatprep.mubr.f32.mxu0 0.0
        %503 = vmatmul.mubr.f32.gmra.mrb[0].mxu0 %v350
        %v504 = vpop.f32.mrb[0].mxu0
        %v505 = vadd.f32 %v359, %v504
        %v506 = vpop.f32.mrb[0].mxu0
        %v507 = vadd.f32 %v363, %v506
        %508 = vmatprep.mubr.f32.mxu0 0.0
        %509 = vmatmul.mubr.f32.gmra.mrb[0].mxu0 %v351
        %v510 = vpop.f32.mrb[0].mxu0
        %v511 = vadd.f32 %v359, %v510
        %v512 = vpop.f32.mrb[0].mxu0
        %v513 = vadd.f32 %v363, %v512
        %514 = vmatprep.mubr.f32.mxu0 0.0
        %515 = vmatmul.mubr.f32.gmra.mrb[0].mxu0 %v352
        %v516 = vpop.f32.mrb[0].mxu0
        %v517 = vadd.f32 %v359, %v516
        %v518 = vpop.f32.mrb[0].mxu0
        %v519 = vadd.f32 %v363, %v518
        %520 = vmatprep.mubr.f32.mxu0 0.0
        %521 = vmatmul.mubr.f32.gmra.mrb[0].mxu0 %v353
        %v522 = vpop.f32.mrb[0].mxu0
        %v523 = vadd.f32 %v359, %v522
        %v524 = vpop.f32.mrb[0].mxu0
        %v525 = vadd.f32 %v363, %v524
        %526 = vdwg.mxu0
        %v527 = vmax.f32 %v433, 0.0
        %v528 = vmax.f32 %v435, 0.0
        %v529 = vmax.f32 %v439, 0.0
        %v530 = vmax.f32 %v441, 0.0
        %v531 = vmax.f32 %v445, 0.0
        %v532 = vmax.f32 %v447, 0.0
        %v533 = vmax.f32 %v451, 0.0
        %v534 = vmax.f32 %v453, 0.0
        %v535 = vmax.f32 %v457, 0.0
        %v536 = vmax.f32 %v459, 0.0
        %v537 = vmax.f32 %v463, 0.0
        %v538 = vmax.f32 %v465, 0.0
        %v539 = vmax.f32 %v469, 0.0
        %v540 = vmax.f32 %v471, 0.0
        %v541 = vmax.f32 %v475, 0.0
        %v542 = vmax.f32 %v477, 0.0
        %v543 = vmax.f32 %v481, 0.0
        %v544 = vmax.f32 %v483, 0.0
        %v545 = vmax.f32 %v487, 0.0
        %v546 = vmax.f32 %v489, 0.0
        %v547 = vmax.f32 %v493, 0.0
        %v548 = vmax.f32 %v495, 0.0
        %v549 = vmax.f32 %v499, 0.0
        %v550 = vmax.f32 %v501, 0.0
        %v551 = vmax.f32 %v505, 0.0
        %v552 = vmax.f32 %v507, 0.0
        %v553 = vmax.f32 %v511, 0.0
        %v554 = vmax.f32 %v513, 0.0
        %v555 = vmax.f32 %v517, 0.0
        %v556 = vmax.f32 %v519, 0.0
        %v557 = vmax.f32 %v523, 0.0
        %v558 = vmax.f32 %v525, 0.0
        %v559 = vld [vmem:[%s4] sm:$0x1]
        %v561 = vlaneseq
        %v562 = vshrl.u32 %v561, 7
        %v563 = vsub.s32 0, %v562
        %v564 = vrot.slane %v559, %v563
        %566 = vmatprep.subr.mxu0 0.0
        %567 = vmatpush1.msra.mxu0 %v306
        %568 = vmatprep.subr.mxu0 0.0
        %569 = vmatpush1.msra.mxu0 %v307
        %570 = vmatprep.subr.mxu0 0.0
        %571 = vmatpush1.msra.mxu0 %v308
        %572 = vmatprep.subr.mxu0 0.0
        %573 = vmatpush1.msra.mxu0 %v309
        %574 = vmatprep.subr.mxu0 0.0
        %575 = vmatpush1.msra.mxu0 %v310
        %576 = vmatprep.subr.mxu0 0.0
        %577 = vmatpush1.msra.mxu0 %v311
        %578 = vmatprep.subr.mxu0 0.0
        %579 = vmatpush1.msra.mxu0 %v312
        %580 = vmatprep.subr.mxu0 0.0
        %581 = vmatpush1.msra.mxu0 %v313
        %582 = vmatprep.subr.mxu0 0.0
        %583 = vmatpush1.msra.mxu0 %v314
        %584 = vmatprep.subr.mxu0 0.0
        %585 = vmatpush1.msra.mxu0 %v315
        %586 = vmatprep.subr.mxu0 0.0
        %587 = vmatpush1.msra.mxu0 %v316
        %588 = vmatprep.subr.mxu0 0.0
        %589 = vmatpush1.msra.mxu0 %v317
        %590 = vmatprep.subr.mxu0 0.0
        %591 = vmatpush1.msra.mxu0 %v318
        %592 = vmatprep.subr.mxu0 0.0
        %593 = vmatpush1.msra.mxu0 %v319
        %594 = vmatprep.subr.mxu0 0.0
        %595 = vmatpush1.msra.mxu0 %v320
        %596 = vmatprep.subr.mxu0 0.0
        %597 = vmatpush1.msra.mxu0 %v321
        %598 = vmatprep.subr.mxu0 0.0
        %599 = vmatpush1.msra.mxu0 %v322
        %600 = vmatprep.subr.mxu0 0.0
        %601 = vmatpush1.msra.mxu0 %v323
        %602 = vmatprep.subr.mxu0 0.0
        %603 = vmatpush1.msra.mxu0 %v324
        %604 = vmatprep.subr.mxu0 0.0
        %605 = vmatpush1.msra.mxu0 %v325
        %606 = vmatprep.subr.mxu0 0.0
        %607 = vmatpush1.msra.mxu0 %v326
        %608 = vmatprep.subr.mxu0 0.0
        %609 = vmatpush1.msra.mxu0 %v327
        %610 = vmatprep.subr.mxu0 0.0
        %611 = vmatpush1.msra.mxu0 %v328
        %612 = vmatprep.subr.mxu0 0.0
        %613 = vmatpush1.msra.mxu0 %v329
        %614 = vmatprep.subr.mxu0 0.0
        %615 = vmatpush1.msra.mxu0 %v330
        %616 = vmatprep.subr.mxu0 0.0
        %617 = vmatpush1.msra.mxu0 %v331
        %618 = vmatprep.subr.mxu0 0.0
        %619 = vmatpush1.msra.mxu0 %v332
        %620 = vmatprep.subr.mxu0 0.0
        %621 = vmatpush1.msra.mxu0 %v333
        %622 = vmatprep.subr.mxu0 0.0
        %623 = vmatpush1.msra.mxu0 %v334
        %624 = vmatprep.subr.mxu0 0.0
        %625 = vmatpush1.msra.mxu0 %v335
        %626 = vmatprep.subr.mxu0 0.0
        %627 = vmatpush1.msra.mxu0 %v336
        %628 = vmatprep.subr.mxu0 0.0
        %629 = vmatpush1.msra.mxu0 %v337
        %630 = vmatprep.mubr.f32.mxu0 %v528
        %631 = vmatmul.mubr.f32.gmra.mrb[0].mxu0 %v527
        %v632 = vpop.f32.mrb[0].mxu0
        %v633 = vadd.f32 %v564, %v632
        %v634 = vpop.f32.mrb[0].mxu0
        %635 = vmatprep.mubr.f32.mxu0 %v530
        %636 = vmatmul.mubr.f32.gmra.mrb[0].mxu0 %v529
        %v637 = vpop.f32.mrb[0].mxu0
        %v638 = vadd.f32 %v564, %v637
        %v639 = vpop.f32.mrb[0].mxu0
        %640 = vmatprep.mubr.f32.mxu0 %v532
        %641 = vmatmul.mubr.f32.gmra.mrb[0].mxu0 %v531
        %v642 = vpop.f32.mrb[0].mxu0
        %v643 = vadd.f32 %v564, %v642
        %v644 = vpop.f32.mrb[0].mxu0
        %645 = vmatprep.mubr.f32.mxu0 %v534
        %646 = vmatmul.mubr.f32.gmra.mrb[0].mxu0 %v533
        %v647 = vpop.f32.mrb[0].mxu0
        %v648 = vadd.f32 %v564, %v647
        %v649 = vpop.f32.mrb[0].mxu0
        %650 = vmatprep.mubr.f32.mxu0 %v536
        %651 = vmatmul.mubr.f32.gmra.mrb[0].mxu0 %v535
        %v652 = vpop.f32.mrb[0].mxu0
        %v653 = vadd.f32 %v564, %v652
        %v654 = vpop.f32.mrb[0].mxu0
        %655 = vmatprep.mubr.f32.mxu0 %v538
        %656 = vmatmul.mubr.f32.gmra.mrb[0].mxu0 %v537
        %v657 = vpop.f32.mrb[0].mxu0
        %v658 = vadd.f32 %v564, %v657
        %v659 = vpop.f32.mrb[0].mxu0
        %660 = vmatprep.mubr.f32.mxu0 %v540
        %661 = vmatmul.mubr.f32.gmra.mrb[0].mxu0 %v539
        %v662 = vpop.f32.mrb[0].mxu0
        %v663 = vadd.f32 %v564, %v662
        %v664 = vpop.f32.mrb[0].mxu0
        %665 = vmatprep.mubr.f32.mxu0 %v542
        %666 = vmatmul.mubr.f32.gmra.mrb[0].mxu0 %v541
        %v667 = vpop.f32.mrb[0].mxu0
        %v668 = vadd.f32 %v564, %v667
        %v669 = vpop.f32.mrb[0].mxu0
        %670 = vmatprep.mubr.f32.mxu0 %v544
        %671 = vmatmul.mubr.f32.gmra.mrb[0].mxu0 %v543
        %v672 = vpop.f32.mrb[0].mxu0
        %v673 = vadd.f32 %v564, %v672
        %v674 = vpop.f32.mrb[0].mxu0
        %675 = vmatprep.mubr.f32.mxu0 %v546
        %676 = vmatmul.mubr.f32.gmra.mrb[0].mxu0 %v545
        %v677 = vpop.f32.mrb[0].mxu0
        %v678 = vadd.f32 %v564, %v677
        %v679 = vpop.f32.mrb[0].mxu0
        %680 = vmatprep.mubr.f32.mxu0 %v548
        %681 = vmatmul.mubr.f32.gmra.mrb[0].mxu0 %v547
        %v682 = vpop.f32.mrb[0].mxu0
        %v683 = vadd.f32 %v564, %v682
        %v684 = vpop.f32.mrb[0].mxu0
        %685 = vmatprep.mubr.f32.mxu0 %v550
        %686 = vmatmul.mubr.f32.gmra.mrb[0].mxu0 %v549
        %v687 = vpop.f32.mrb[0].mxu0
        %v688 = vadd.f32 %v564, %v687
        %v689 = vpop.f32.mrb[0].mxu0
        %690 = vmatprep.mubr.f32.mxu0 %v552
        %691 = vmatmul.mubr.f32.gmra.mrb[0].mxu0 %v551
        %v692 = vpop.f32.mrb[0].mxu0
        %v693 = vadd.f32 %v564, %v692
        %v694 = vpop.f32.mrb[0].mxu0
        %695 = vmatprep.mubr.f32.mxu0 %v554
        %696 = vmatmul.mubr.f32.gmra.mrb[0].mxu0 %v553
        %v697 = vpop.f32.mrb[0].mxu0
        %v698 = vadd.f32 %v564, %v697
        %v699 = vpop.f32.mrb[0].mxu0
        %700 = vmatprep.mubr.f32.mxu0 %v556
        %701 = vmatmul.mubr.f32.gmra.mrb[0].mxu0 %v555
        %v702 = vpop.f32.mrb[0].mxu0
        %v703 = vadd.f32 %v564, %v702
        %v704 = vpop.f32.mrb[0].mxu0
        %705 = vmatprep.mubr.f32.mxu0 %v558
        %706 = vmatmul.mubr.f32.gmra.mrb[0].mxu0 %v557
        %v707 = vpop.f32.mrb[0].mxu0
        %v708 = vadd.f32 %v564, %v707
        %v709 = vpop.f32.mrb[0].mxu0
        %710 = vdwg.mxu0
        %711 = vst [vmem:[%s271] sm:$0xff] %v633
        %712 = vst [vmem:[%s271 + $0x8] sm:$0xff] %v638
        %713 = vst [vmem:[%s271 + $0x10] sm:$0xff] %v643
        %714 = vst [vmem:[%s271 + $0x18] sm:$0xff] %v648
        %715 = vst [vmem:[%s271 + $0x20] sm:$0xff] %v653
        %716 = vst [vmem:[%s271 + $0x28] sm:$0xff] %v658
        %717 = vst [vmem:[%s271 + $0x30] sm:$0xff] %v663
        %718 = vst [vmem:[%s271 + $0x38] sm:$0xff] %v668
        %719 = vst [vmem:[%s271 + $0x40] sm:$0xff] %v673
        %720 = vst [vmem:[%s271 + $0x48] sm:$0xff] %v678
        %721 = vst [vmem:[%s271 + $0x50] sm:$0xff] %v683
        %722 = vst [vmem:[%s271 + $0x58] sm:$0xff] %v688
        %723 = vst [vmem:[%s271 + $0x60] sm:$0xff] %v693
        %724 = vst [vmem:[%s271 + $0x68] sm:$0xff] %v698
        %725 = vst [vmem:[%s271 + $0x70] sm:$0xff] %v703
        %726 = vst [vmem:[%s271 + $0x78] sm:$0xff] %v708
        %s727 = sand.u32 %s141, 1
        %s728 = scalar_lea.sflag [#allocation4], %s727
        %s729 = sand.u32 %s141, 1
        %s730 = smul.addr %s729, 128
        %s731 = scalar_lea.vmem [#allocation8], %s730
        // Predicated region
        $region53: #{feed_forward.1} parent=39 // pred_check
          %p732 = pneg %p151
        $region54: #{feed_forward.1} parent=39 // pred_check_branch
          %734 = sbr.rel (%p732) target = $region56
        $region55: #{feed_forward.1} parent=39 // pred_region
          %s735 = smul.u32 16, %s23
          %s737 = ssub.s32 2048, 2048
          %738 = vsyncadd %s728, %s737
          %s739 = smul.addr %s735, 128
          %s740 = scalar_lea.hbm %s5, %s739
          %s741 = sshll.u32 %s731, 4
          %s742 = int_to_ptr.vmem [resolvable:$true] %s741
          %747 = dma.vmem_to_hbm [thread:$0]  %s742, 2048, %s740, %s728, 128, 128, 8
        $region56: #{feed_forward.1} parent=39 // pred_fallthru
          _
      $region40: #{feed_forward.1} parent=5 // pred_fallthru
        _
      %p748 = scmp.le.s32.totalorder 2, %s18
      // Predicated region
      $region57: #{feed_forward.1} parent=5 // pred_check
        %p749 = pneg %p748
      $region58: #{feed_forward.1} parent=5 // pred_check_branch
        %751 = sbr.rel (%p749) target = $region60
      $region59: #{feed_forward.1} parent=5 // pred_region
        %s752 = ssub.s32 %s18, 2
        // Predicated region
        $region61: #{feed_forward.1} parent=59 // pred_check
          %p753 = pneg %p157
        $region62: #{feed_forward.1} parent=59 // pred_check_branch
          %755 = sbr.rel (%p753) target = $region64
        $region63: #{feed_forward.1} parent=59 // pred_region
          %s756 = sand.u32 %s142, 1
          %s757 = scalar_lea.sflag [#allocation4], %s756
          %s758 = sand.u32 %s142, 1
          %s759 = smul.addr %s758, 128
          %s760 = scalar_lea.vmem [#allocation8], %s759
          %761 = dma.done %s757, 2048
        $region64: #{feed_forward.1} parent=59 // pred_fallthru
          _
      $region60: #{feed_forward.1} parent=5 // pred_fallthru
        _
    $region6: #{feed_forward.1} parent=1 // loop_footer
      %s22 = sadd.s32 1, %s18
    $region7: #{feed_forward.1} parent=1 // loop_footer_branch
      %17 = sbr.rel target = $region3
    $region8: #{feed_forward.1} parent=1 // loop_exit
      _
    %762 = vsyncpa [#allocation3], 1
    %s763 = scalar_lea.sflag [#allocation3], 1
    %764 = vsyncpa %s763, 1
    %765 = vsyncpa [#allocation6], 1
    %766 = vsyncpa [#allocation4], 1
    %s767 = scalar_lea.sflag [#allocation4], 1
    %768 = vsyncpa %s767, 1

</llo_original>
